<compile_context>
chip_gen: v6e
topology: v6e:2x2x1
jax: 0.10.0
libtpu: 0.0.40
codegen_flags: <defaults>
</compile_context>

<pallas_src>
import functools

import jax
import jax.numpy as jnp
from jax import lax
from jax.experimental import pallas as pl
from jax.experimental.pallas import tpu as pltpu


_TM_CAP = 512    # rows of x per tile (sublane axis, multiple of 8)
_TN_CAP = 512    # out_features per tile (lane axis, multiple of 128)
_TK_CAP = 1024   # in_features (reduction) per tile (multiple of 128)


def _round_up(v, m):
    return (v + m - 1) // m * m


def _balanced_tile(dim, cap, granule):
    """Split `dim` into n equal tiles of size t (multiple of `granule`, t <= cap,
    cap a multiple of granule), with minimal zero padding.  Returns (t, n*t)."""
    n = max(1, -(-dim // cap))
    t = _round_up(-(-dim // n), granule)
    return t, n * t


def _largest_div_tile(padded, cap, granule):
    """Largest multiple of `granule` <= cap that divides `padded`."""
    best = granule
    t = granule
    while t <= min(cap, padded):
        if padded % t == 0:
            best = t
        t += granule
    return best


def _pad2(a, rows, cols):
    r, c = a.shape
    if r == rows and c == cols:
        return a
    return jnp.pad(a, ((0, rows - r), (0, cols - c)))


def _clinear_kernel(xr_ref, xi_ref, wr_ref, wi_ref, ore_ref, oim_ref):
    """One (tm, tn) complex output tile, accumulating over the K grid axis.

    xr_ref/xi_ref  : (tm, tk) real / imag input tiles
    wr_ref/wi_ref  : (tk, tn) real / imag weight tiles (already W^T, lane-dense)
    ore_ref/oim_ref: (tm, tn) f32 output tiles, resident across K (accumulators)
    """
    @pl.when(pl.program_id(2) == 0)
    def _():
        ore_ref[...] = jnp.zeros_like(ore_ref)
        oim_ref[...] = jnp.zeros_like(oim_ref)

    xr = xr_ref[...]
    xi = xi_ref[...]
    wr = wr_ref[...]
    wi = wi_ref[...]

    # Gauss / Karatsuba complex multiply: 3 MXU matmuls instead of 4.
    #   re += t1 - t2,   im += t3 - t1 - t2,  with
    #   t1 = xr@wr, t2 = xi@wi, t3 = (xr+xi)@(wr+wi)
    # Each product is folded into the resident f32 output tiles immediately,
    # so only one (tm, tn) product is live at any time.
    t1 = jnp.dot(xr, wr, preferred_element_type=jnp.float32)
    ore_ref[...] += t1
    oim_ref[...] -= t1
    t2 = jnp.dot(xi, wi, preferred_element_type=jnp.float32)
    ore_ref[...] -= t2
    oim_ref[...] -= t2
    t3 = jnp.dot(xr + xi, wr + wi, preferred_element_type=jnp.float32)
    oim_ref[...] += t3


def _clinear_matmul(xr, xi, wrt_p, wit_p, *, tn, tk):
    """Core pallas_call.  xr/xi: (M, K) planes, wrt_p/wit_p: (Kp, Np) padded W^T."""
    M, K = xr.shape
    Kp, Np = wrt_p.shape

    tm, Mp = _balanced_tile(M, _TM_CAP, 8)
    grid_m = Mp // tm

    # v7x has two TensorCores sharded over the "parallel" grid axes: if M only
    # yields one tile, split N instead (tn stays a 128-multiple divisor of Np,
    # so the init-time weight padding is reused).  Near-neutral on v5e/v6e.
    if grid_m == 1 and Np // tn < 2 and Np >= 256:
        tn = _largest_div_tile(Np, Np // 2, 128)
    grid_n = Np // tn
    grid_k = Kp // tk

    if Mp != M or Kp != K:
        xr = _pad2(xr, Mp, Kp)
        xi = _pad2(xi, Mp, Kp)

    x_spec = pl.BlockSpec((tm, tk), lambda i, j, k: (i, k))
    w_spec = pl.BlockSpec((tk, tn), lambda i, j, k: (k, j))
    o_spec = pl.BlockSpec((tm, tn), lambda i, j, k: (i, j))

    itemsize = xr.dtype.itemsize
    # Double-buffered inputs + weights + (f32) outputs.
    tile_bytes = (2 * 2 * (tm * tk + tk * tn)) * itemsize + 2 * 2 * tm * tn * 4
    try:
        vmem_cap = int(pltpu.get_tpu_info().vmem_capacity_bytes)
    except Exception:
        vmem_cap = 64 * 1024 * 1024  # v7x-safe fallback
    vmem_limit = int(min(max(2 * tile_bytes, 32 << 20), (vmem_cap * 3) // 4))

    cost = pl.CostEstimate(
        flops=2 * 3 * Mp * Kp * Np,                       # 3 real matmuls
        transcendentals=0,
        bytes_accessed=itemsize * 2 * (Mp * Kp + Kp * Np) + 4 * 2 * Mp * Np)

    ore, oim = pl.pallas_call(
        _clinear_kernel,
        grid_spec=pltpu.PrefetchScalarGridSpec(
            num_scalar_prefetch=0,
            grid=(grid_m, grid_n, grid_k),
            in_specs=[x_spec, x_spec, w_spec, w_spec],
            out_specs=(o_spec, o_spec)),
        out_shape=(jax.ShapeDtypeStruct((Mp, Np), jnp.float32),
                   jax.ShapeDtypeStruct((Mp, Np), jnp.float32)),
        compiler_params=pltpu.CompilerParams(
            dimension_semantics=("parallel", "parallel", "arbitrary"),
            vmem_limit_bytes=vmem_limit),
        cost_estimate=cost,
    )(xr, xi, wrt_p, wit_p)
    return ore, oim


@functools.partial(jax.jit, static_argnames=("N", "K", "tn", "tk"))
def _complex_linear_prepared(x, wrt_p, wit_p, *, N, K, tn, tk):
    """Forward with weights already transposed to (Kp, Np) and zero-padded."""
    *lead, K_in = x.shape
    assert K_in == K
    xr = jnp.real(x).astype(wrt_p.dtype).reshape(-1, K)
    xi = jnp.imag(x).astype(wrt_p.dtype).reshape(-1, K)
    M = xr.shape[0]

    ore, oim = _clinear_matmul(xr, xi, wrt_p, wit_p, tn=tn, tk=tk)
    out = lax.complex(ore[:M, :N], oim[:M, :N]).astype(jnp.complex64)
    return out.reshape(*lead, N)


def complex_linear(x, w_r, w_i, *, compute_dtype=jnp.float32):
    """Functional ComplexLinear forward.

    x   : complex array (..., in_features)
    w_r : (out_features, in_features)  fc_r.weight (PyTorch layout)
    w_i : (out_features, in_features)  fc_i.weight
    """
    N, K = w_r.shape
    assert w_i.shape == (N, K)
    tk, Kp = _balanced_tile(K, _TK_CAP, 128)
    tn, Np = _balanced_tile(N, _TN_CAP, 128)
    wrt = _pad2(jnp.asarray(w_r, jnp.float32).T, Kp, Np).astype(compute_dtype)
    wit = _pad2(jnp.asarray(w_i, jnp.float32).T, Kp, Np).astype(compute_dtype)
    return _complex_linear_prepared(x, wrt, wit, N=N, K=K, tn=tn, tk=tk)


class ComplexLinear:
    """Pallas port of complexLayers.ComplexLinear (two bias-free Linears).

    Weight transpose + zero-padding (lane-dense (K, N) layout) is hoisted to
    __init__ so the per-forward cost is one fused pallas_call plus the
    real/imag de-interleave of x.  Set compute_dtype=jnp.bfloat16 for a faster
    (lower-precision) MXU path; accumulation stays f32 either way.
    """

    def __init__(self, in_features, out_features, *, key=None,
                 compute_dtype=jnp.float32):
        if key is None:
            key = jax.random.PRNGKey(0)
        kr, ki = jax.random.split(key)
        bound = 1.0 / (in_features ** 0.5)  # torch.nn.Linear default init range
        self.w_r = jax.random.uniform(kr, (out_features, in_features),
                                      jnp.float32, -bound, bound)
        self.w_i = jax.random.uniform(ki, (out_features, in_features),
                                      jnp.float32, -bound, bound)
        self.in_features = in_features
        self.out_features = out_features

        self._tk, Kp = _balanced_tile(in_features, _TK_CAP, 128)
        self._tn, Np = _balanced_tile(out_features, _TN_CAP, 128)
        self._wrt = _pad2(self.w_r.T, Kp, Np).astype(compute_dtype)
        self._wit = _pad2(self.w_i.T, Kp, Np).astype(compute_dtype)

    def __call__(self, x):
        return _complex_linear_prepared(
            x, self._wrt, self._wit,
            N=self.out_features, K=self.in_features,
            tn=self._tn, tk=self._tk)


if __name__ == "__main__":
    import numpy as np

    key = jax.random.PRNGKey(0)
    kxr, kxi, kw = jax.random.split(key, 3)

    batch, seq, in_features, out_features = 2, 8, 32, 64
    xr = jax.random.normal(kxr, (batch, seq, in_features), jnp.float32)
    xi = jax.random.normal(kxi, (batch, seq, in_features), jnp.float32)
    x = lax.complex(xr, xi).astype(jnp.complex64)

    layer = ComplexLinear(in_features, out_features, key=kw)
    out = jax.block_until_ready(layer(x))

    assert out.shape == (batch, seq, out_features)
    assert out.dtype == jnp.complex64

    # Pure-JAX reference of apply_complex(fc_r, fc_i, x) with bias-free Linears.
    wr_t, wi_t = layer.w_r.T, layer.w_i.T
    ref_re = xr @ wr_t - xi @ wi_t
    ref_im = xi @ wr_t + xr @ wi_t
    ref = lax.complex(ref_re, ref_im).astype(jnp.complex64)

    # Tolerance slightly relaxed vs 1e-5: the Gauss 3-matmul form rounds a
    # little differently from the naive 4-matmul reference (still f32 accum).
    np.testing.assert_allclose(np.asarray(out), np.asarray(ref),
                               rtol=1e-4, atol=1e-4)

    print("KERNEL_OK")
</pallas_src>

<mosaic_0001>
module attributes {stable_mosaic.version = 11 : i64} {
  func.func @_clinear_kernel(%arg0: i32, %arg1: i32, %arg2: i32, %arg3: memref<16x128xf32, #tpu.memory_space<vmem>>, %arg4: memref<16x128xf32, #tpu.memory_space<vmem>>, %arg5: memref<128x128xf32, #tpu.memory_space<vmem>>, %arg6: memref<128x128xf32, #tpu.memory_space<vmem>>, %arg7: memref<16x128xf32, #tpu.memory_space<vmem>>, %arg8: memref<16x128xf32, #tpu.memory_space<vmem>>) attributes {dimension_semantics = [#tpu.dimension_semantics<parallel>, #tpu.dimension_semantics<parallel>, #tpu.dimension_semantics<arbitrary>], iteration_bounds = array<i64: 1, 1, 1>, scalar_prefetch = 0 : i64, scratch_operands = 0 : i64, tpu.core_type = #tpu.core_type<tc>, window_params = [{transform_indices = @transform_0, window_bounds = array<i64: 16, 128>}, {transform_indices = @transform_1, window_bounds = array<i64: 16, 128>}, {transform_indices = @transform_2, window_bounds = array<i64: 128, 128>}, {transform_indices = @transform_3, window_bounds = array<i64: 128, 128>}, {transform_indices = @transform_4, window_bounds = array<i64: 16, 128>}, {transform_indices = @transform_5, window_bounds = array<i64: 16, 128>}]} {
    %c0_i32 = arith.constant 0 : i32
    %0 = arith.cmpi eq, %arg2, %c0_i32 : i32
    %1 = arith.extui %0 : i1 to i32
    %c0_i32_0 = arith.constant 0 : i32
    %2 = arith.cmpi ne, %1, %c0_i32_0 : i32
    scf.if %2 {
      %cst_30 = arith.constant 0.000000e+00 : f32
      %27 = vector.broadcast %cst_30 : f32 to vector<16x128xf32>
      %c0_31 = arith.constant 0 : index
      %c0_32 = arith.constant 0 : index
      %28 = vector.load %arg7[%c0_31, %c0_32] : memref<16x128xf32, #tpu.memory_space<vmem>>, vector<16x128xf32>
      tpu.vector_store %arg7[%c0_31, %c0_32], %27 {strides = array<i32>} : memref<16x128xf32, #tpu.memory_space<vmem>>, vector<16x128xf32>,
      %cst_33 = arith.constant 0.000000e+00 : f32
      %29 = vector.broadcast %cst_33 : f32 to vector<16x128xf32>
      %c0_34 = arith.constant 0 : index
      %c0_35 = arith.constant 0 : index
      %30 = vector.load %arg8[%c0_34, %c0_35] : memref<16x128xf32, #tpu.memory_space<vmem>>, vector<16x128xf32>
      tpu.vector_store %arg8[%c0_34, %c0_35], %29 {strides = array<i32>} : memref<16x128xf32, #tpu.memory_space<vmem>>, vector<16x128xf32>,
    } else {
    }
    %c0 = arith.constant 0 : index
    %c0_1 = arith.constant 0 : index
    %3 = vector.load %arg3[%c0, %c0_1] : memref<16x128xf32, #tpu.memory_space<vmem>>, vector<16x128xf32>
    %c0_2 = arith.constant 0 : index
    %c0_3 = arith.constant 0 : index
    %4 = vector.load %arg4[%c0_2, %c0_3] : memref<16x128xf32, #tpu.memory_space<vmem>>, vector<16x128xf32>
    %c0_4 = arith.constant 0 : index
    %c0_5 = arith.constant 0 : index
    %5 = vector.load %arg5[%c0_4, %c0_5] : memref<128x128xf32, #tpu.memory_space<vmem>>, vector<128x128xf32>
    %c0_6 = arith.constant 0 : index
    %c0_7 = arith.constant 0 : index
    %6 = vector.load %arg6[%c0_6, %c0_7] : memref<128x128xf32, #tpu.memory_space<vmem>>, vector<128x128xf32>
    %cst = arith.constant dense<0.000000e+00> : vector<16x128xf32>
    %7 = tpu.matmul %3, %5, %cst {dimension_numbers = #tpu.dot_dimension_numbers<[1], [0], [0], [1], [0, 0, 1, 1], [], []>} : vector<16x128xf32>, vector<128x128xf32>, vector<16x128xf32> -> vector<16x128xf32>
    %c0_8 = arith.constant 0 : index
    %c0_9 = arith.constant 0 : index
    %8 = vector.load %arg7[%c0_8, %c0_9] : memref<16x128xf32, #tpu.memory_space<vmem>>, vector<16x128xf32>
    %9 = arith.addf %8, %7 : vector<16x128xf32>
    %c0_10 = arith.constant 0 : index
    %c0_11 = arith.constant 0 : index
    %10 = vector.load %arg7[%c0_10, %c0_11] : memref<16x128xf32, #tpu.memory_space<vmem>>, vector<16x128xf32>
    tpu.vector_store %arg7[%c0_10, %c0_11], %9 {strides = array<i32>} : memref<16x128xf32, #tpu.memory_space<vmem>>, vector<16x128xf32>,
    %c0_12 = arith.constant 0 : index
    %c0_13 = arith.constant 0 : index
    %11 = vector.load %arg8[%c0_12, %c0_13] : memref<16x128xf32, #tpu.memory_space<vmem>>, vector<16x128xf32>
    %12 = arith.subf %11, %7 : vector<16x128xf32>
    %c0_14 = arith.constant 0 : index
    %c0_15 = arith.constant 0 : index
    %13 = vector.load %arg8[%c0_14, %c0_15] : memref<16x128xf32, #tpu.memory_space<vmem>>, vector<16x128xf32>
    tpu.vector_store %arg8[%c0_14, %c0_15], %12 {strides = array<i32>} : memref<16x128xf32, #tpu.memory_space<vmem>>, vector<16x128xf32>,
    %cst_16 = arith.constant dense<0.000000e+00> : vector<16x128xf32>
    %14 = tpu.matmul %4, %6, %cst_16 {dimension_numbers = #tpu.dot_dimension_numbers<[1], [0], [0], [1], [0, 0, 1, 1], [], []>} : vector<16x128xf32>, vector<128x128xf32>, vector<16x128xf32> -> vector<16x128xf32>
    %c0_17 = arith.constant 0 : index
    %c0_18 = arith.constant 0 : index
    %15 = vector.load %arg7[%c0_17, %c0_18] : memref<16x128xf32, #tpu.memory_space<vmem>>, vector<16x128xf32>
    %16 = arith.subf %15, %14 : vector<16x128xf32>
    %c0_19 = arith.constant 0 : index
    %c0_20 = arith.constant 0 : index
    %17 = vector.load %arg7[%c0_19, %c0_20] : memref<16x128xf32, #tpu.memory_space<vmem>>, vector<16x128xf32>
    tpu.vector_store %arg7[%c0_19, %c0_20], %16 {strides = array<i32>} : memref<16x128xf32, #tpu.memory_space<vmem>>, vector<16x128xf32>,
    %c0_21 = arith.constant 0 : index
    %c0_22 = arith.constant 0 : index
    %18 = vector.load %arg8[%c0_21, %c0_22] : memref<16x128xf32, #tpu.memory_space<vmem>>, vector<16x128xf32>
    %19 = arith.subf %18, %14 : vector<16x128xf32>
    %c0_23 = arith.constant 0 : index
    %c0_24 = arith.constant 0 : index
    %20 = vector.load %arg8[%c0_23, %c0_24] : memref<16x128xf32, #tpu.memory_space<vmem>>, vector<16x128xf32>
    tpu.vector_store %arg8[%c0_23, %c0_24], %19 {strides = array<i32>} : memref<16x128xf32, #tpu.memory_space<vmem>>, vector<16x128xf32>,
    %21 = arith.addf %3, %4 : vector<16x128xf32>
    %22 = arith.addf %5, %6 : vector<128x128xf32>
    %cst_25 = arith.constant dense<0.000000e+00> : vector<16x128xf32>
    %23 = tpu.matmul %21, %22, %cst_25 {dimension_numbers = #tpu.dot_dimension_numbers<[1], [0], [0], [1], [0, 0, 1, 1], [], []>} : vector<16x128xf32>, vector<128x128xf32>, vector<16x128xf32> -> vector<16x128xf32>
    %c0_26 = arith.constant 0 : index
    %c0_27 = arith.constant 0 : index
    %24 = vector.load %arg8[%c0_26, %c0_27] : memref<16x128xf32, #tpu.memory_space<vmem>>, vector<16x128xf32>
    %25 = arith.addf %24, %23 : vector<16x128xf32>
    %c0_28 = arith.constant 0 : index
    %c0_29 = arith.constant 0 : index
    %26 = vector.load %arg8[%c0_28, %c0_29] : memref<16x128xf32, #tpu.memory_space<vmem>>, vector<16x128xf32>
    tpu.vector_store %arg8[%c0_28, %c0_29], %25 {strides = array<i32>} : memref<16x128xf32, #tpu.memory_space<vmem>>, vector<16x128xf32>,
    return
  }
  func.func @transform_0(%arg0: i32, %arg1: i32, %arg2: i32) -> (i32, i32) {
    %c0_i32 = arith.constant 0 : i32
    return %arg0, %arg2 : i32, i32
  }
  func.func @transform_1(%arg0: i32, %arg1: i32, %arg2: i32) -> (i32, i32) {
    %c0_i32 = arith.constant 0 : i32
    return %arg0, %arg2 : i32, i32
  }
  func.func @transform_2(%arg0: i32, %arg1: i32, %arg2: i32) -> (i32, i32) {
    %c0_i32 = arith.constant 0 : i32
    return %arg2, %arg1 : i32, i32
  }
  func.func @transform_3(%arg0: i32, %arg1: i32, %arg2: i32) -> (i32, i32) {
    %c0_i32 = arith.constant 0 : i32
    return %arg2, %arg1 : i32, i32
  }
  func.func @transform_4(%arg0: i32, %arg1: i32, %arg2: i32) -> (i32, i32) {
    %c0_i32 = arith.constant 0 : i32
    return %arg0, %arg1 : i32, i32
  }
  func.func @transform_5(%arg0: i32, %arg1: i32, %arg2: i32) -> (i32, i32) {
    %c0_i32 = arith.constant 0 : i32
    return %arg0, %arg1 : i32, i32
  }
}

</mosaic_0001>

<llo_original>
// kernel: custom-call.1
$region0: #{custom-call.1}
  %s0 = inlined_call_operand.hbm [shape: c64[2,8,32], index: 0, kind: input, shape index: {}]
  %s1 = inlined_call_operand.vmem [shape: f32[2,8,32], index: 1, kind: output, shape index: {}]
  %s2 = scalar_lea.hbm %s0, 256
  $region1: #{custom-call.1} parent=0
    #allocation0 [shape = 's32[1]{0}', space=sflag, size = 0x4, scoped, tag = 'scoped memory for custom-call.1']
    %3 = vsyncpa [#allocation0], 0
    %s4 = sshll.u32 %s1, 4
    %s5 = int_to_ptr.vmem [resolvable:$true] %s4
    %7 = dma.hbm_to_vmem [thread:$0]  %s2, 256, %s5, [#allocation0]
    %8 = dma.done [#allocation0], 256
    %9 = vsyncpa [#allocation0], 1

// kernel: custom-call
$region0: #{custom-call}
  %s0 = inlined_call_operand.hbm [shape: c64[2,8,32], index: 0, kind: input, shape index: {}]
  %s1 = inlined_call_operand.vmem [shape: f32[2,8,32], index: 1, kind: output, shape index: {}]
  $region1: #{custom-call} parent=0
    #allocation0 [shape = 's32[1]{0}', space=sflag, size = 0x4, scoped, tag = 'scoped memory for custom-call']
    %2 = vsyncpa [#allocation0], 0
    %s3 = sshll.u32 %s1, 4
    %s4 = int_to_ptr.vmem [resolvable:$true] %s3
    %6 = dma.hbm_to_vmem [thread:$0]  %s0, 256, %s4, [#allocation0]
    %7 = dma.done [#allocation0], 256
    %8 = vsyncpa [#allocation0], 1

// kernel: custom-call.2
$region0: #{custom-call.2}
  %s0 = inlined_call_operand.vmem [shape: f32[2,8,64], index: 0, kind: input, shape index: {}]
  %s1 = inlined_call_operand.vmem [shape: f32[2,8,64], index: 1, kind: input, shape index: {}]
  %s2 = inlined_call_operand.hbm [shape: c64[2,8,64], index: 2, kind: output, shape index: {}]
  %s3 = scalar_lea.hbm %s2, 256
  $region1: #{custom-call.2} parent=0
    #allocation0 [shape = 's32[1]{0}', space=sflag, size = 0x4, scoped, tag = 'scoped memory for custom-call.2']
    %4 = vsyncpa [#allocation0], 0
    %s5 = sshll.u32 %s0, 4
    %s6 = int_to_ptr.vmem [resolvable:$true] %s5
    %8 = dma.vmem_to_hbm [thread:$0]  %s6, 256, %s2, [#allocation0]
    %9 = dma.done [#allocation0], 256
    %10 = vsyncpa [#allocation0], 1
  $region2: #{custom-call.2} parent=0
    #allocation1 [shape = 's32[1]{0}', space=sflag, size = 0x4, scoped, tag = 'scoped memory for custom-call.2']
    %11 = vsyncpa [#allocation1], 0
    %s12 = sshll.u32 %s1, 4
    %s13 = int_to_ptr.vmem [resolvable:$true] %s12
    %15 = dma.vmem_to_hbm [thread:$0]  %s13, 256, %s3, [#allocation1]
    %16 = dma.done [#allocation1], 256
    %17 = vsyncpa [#allocation1], 1

// kernel: _complex_linear_prepared.1
$region0: #{_complex_linear_prepared.1}
  #allocation0 [shape = 'u32[]', space=smem, size = 0x4, offset = 0x4, fixed_abs, tag = 'smem constant byte address 0x4 - core index']
  #allocation1 [shape = 'u32[144,128]{1,0:T(1,128)}', space=vmem, size = 0x12000, scoped, tag = 'internal scratch']
  %s0 = inlined_call_operand.vmem [shape: f32[16,128], index: 0, kind: input, shape index: {}]
  %s1 = inlined_call_operand.vmem [shape: f32[16,128], index: 1, kind: input, shape index: {}]
  %s2 = inlined_call_operand.hbm [shape: f32[128,128], index: 2, kind: input, shape index: {}]
  %s3 = inlined_call_operand.hbm [shape: f32[128,128], index: 3, kind: input, shape index: {}]
  %s4 = inlined_call_operand.vmem [shape: f32[16,128], index: 4, kind: output, shape index: {0}]
  %s5 = inlined_call_operand.vmem [shape: f32[16,128], index: 5, kind: output, shape index: {1}]
  %6 = xla_tuple %s4, %s5
  %s7 = sld [smem:[#allocation0]]
  $region46: #{_complex_linear_prepared.1} parent=0
    _
  %s9 = ssub.s32 1, %s7
  %s10 = scalar_select 0, %s9, %s7
  $region1: #{_complex_linear_prepared.1} parent=0
    #allocation2 [shape = 'u8[65536]{0}', space=vmem, size = 0x10000, scoped, tag = 'input window, operand 2, single buffered']
    #allocation3 [shape = 's32[1]{0}', space=sflag, size = 0x4, scoped, tag = 'scoped memory for _complex_linear_prepared.1']
    #allocation4 [shape = 'u8[65536]{0}', space=vmem, size = 0x10000, scoped, tag = 'input window, operand 3, single buffered']
    #allocation5 [shape = 's32[1]{0}', space=sflag, size = 0x4, scoped, tag = 'scoped memory for _complex_linear_prepared.1']
    %11 = vsyncpa [#allocation3], 0
    %12 = vsyncpa [#allocation5], 0
    // Predicated region
    $region2: #{_complex_linear_prepared.1} parent=1 // pred_check
      _
    $region3: #{_complex_linear_prepared.1} parent=1 // pred_check_branch
      %14 = sbr.rel (0) target = $region5
    $region4: #{_complex_linear_prepared.1} parent=1 // pred_region
      _
    $region5: #{_complex_linear_prepared.1} parent=1 // pred_fallthru
      _
    // Predicated region
    $region6: #{_complex_linear_prepared.1} parent=1 // pred_check
      _
    $region7: #{_complex_linear_prepared.1} parent=1 // pred_check_branch
      %16 = sbr.rel (0) target = $region9
    $region8: #{_complex_linear_prepared.1} parent=1 // pred_region
      _
    $region9: #{_complex_linear_prepared.1} parent=1 // pred_fallthru
      _
    // Predicated region
    $region10: #{_complex_linear_prepared.1} parent=1 // pred_check
      _
    $region11: #{_complex_linear_prepared.1} parent=1 // pred_check_branch
      %18 = sbr.rel (0) target = $region13
    $region12: #{_complex_linear_prepared.1} parent=1 // pred_region
      %s20 = ssub.s32 2048, 2048
      %21 = vsyncadd [#allocation3], %s20
      %s22 = sshll.u32 [#allocation2], 4
      %s23 = int_to_ptr.vmem [resolvable:$true] %s22
      %28 = dma.hbm_to_vmem [thread:$0]  %s2, 2048, %s23, [#allocation3], 128, 128, 8
    $region13: #{_complex_linear_prepared.1} parent=1 // pred_fallthru
      _
    // Predicated region
    $region14: #{_complex_linear_prepared.1} parent=1 // pred_check
      _
    $region15: #{_complex_linear_prepared.1} parent=1 // pred_check_branch
      %30 = sbr.rel (0) target = $region17
    $region16: #{_complex_linear_prepared.1} parent=1 // pred_region
      %s32 = ssub.s32 2048, 2048
      %33 = vsyncadd [#allocation5], %s32
      %s34 = sshll.u32 [#allocation4], 4
      %s35 = int_to_ptr.vmem [resolvable:$true] %s34
      %40 = dma.hbm_to_vmem [thread:$0]  %s3, 2048, %s35, [#allocation5], 128, 128, 8
    $region17: #{_complex_linear_prepared.1} parent=1 // pred_fallthru
      _
    // Predicated region
    $region18: #{_complex_linear_prepared.1} parent=1 // pred_check
      _
    $region19: #{_complex_linear_prepared.1} parent=1 // pred_check_branch
      %42 = sbr.rel (0) target = $region21
    $region20: #{_complex_linear_prepared.1} parent=1 // pred_region
      %43 = dma.done [#allocation3], 2048
    $region21: #{_complex_linear_prepared.1} parent=1 // pred_fallthru
      _
    // Predicated region
    $region22: #{_complex_linear_prepared.1} parent=1 // pred_check
      _
    $region23: #{_complex_linear_prepared.1} parent=1 // pred_check_branch
      %45 = sbr.rel (0) target = $region25
    $region24: #{_complex_linear_prepared.1} parent=1 // pred_region
      %46 = dma.done [#allocation5], 2048
    $region25: #{_complex_linear_prepared.1} parent=1 // pred_fallthru
      _
    %p47 = scmp.eq.s32.totalorder 0, 0
    // Predicated region
    $region26: #{_complex_linear_prepared.1} parent=1 // pred_check
      %p48 = pneg %p47
    $region27: #{_complex_linear_prepared.1} parent=1 // pred_check_branch
      %50 = sbr.rel (%p48) target = $region29
    $region28: #{_complex_linear_prepared.1} parent=1 // pred_region
      %51 = vst [vmem:[%s4] sm:$0xff] 0.0
      %52 = vst [vmem:[%s4 + $0x8] sm:$0xff] 0.0
      %53 = vst [vmem:[%s5] sm:$0xff] 0.0
      %54 = vst [vmem:[%s5 + $0x8] sm:$0xff] 0.0
    $region29: #{_complex_linear_prepared.1} parent=1 // pred_fallthru
      _
    %v55 = vld [vmem:[%s0] sm:$0xff]
    %v56 = vld [vmem:[%s0 + $0x8] sm:$0xff]
    %v57 = vld [vmem:[%s1] sm:$0xff]
    %v58 = vld [vmem:[%s1 + $0x8] sm:$0xff]
    %v59 = vld [vmem:[#allocation2] sm:$0xff]
    %v60 = vld [vmem:[#allocation2 + $0x8] sm:$0xff]
    %v61 = vld [vmem:[#allocation2 + $0x10] sm:$0xff]
    %v62 = vld [vmem:[#allocation2 + $0x18] sm:$0xff]
    %v63 = vld [vmem:[#allocation2 + $0x20] sm:$0xff]
    %v64 = vld [vmem:[#allocation2 + $0x28] sm:$0xff]
    %v65 = vld [vmem:[#allocation2 + $0x30] sm:$0xff]
    %v66 = vld [vmem:[#allocation2 + $0x38] sm:$0xff]
    %v67 = vld [vmem:[#allocation2 + $0x40] sm:$0xff]
    %v68 = vld [vmem:[#allocation2 + $0x48] sm:$0xff]
    %v69 = vld [vmem:[#allocation2 + $0x50] sm:$0xff]
    %v70 = vld [vmem:[#allocation2 + $0x58] sm:$0xff]
    %v71 = vld [vmem:[#allocation2 + $0x60] sm:$0xff]
    %v72 = vld [vmem:[#allocation2 + $0x68] sm:$0xff]
    %v73 = vld [vmem:[#allocation2 + $0x70] sm:$0xff]
    %v74 = vld [vmem:[#allocation2 + $0x78] sm:$0xff]
    %v75 = vld [vmem:[#allocation4] sm:$0xff]
    %v76 = vld [vmem:[#allocation4 + $0x8] sm:$0xff]
    %v77 = vld [vmem:[#allocation4 + $0x10] sm:$0xff]
    %v78 = vld [vmem:[#allocation4 + $0x18] sm:$0xff]
    %v79 = vld [vmem:[#allocation4 + $0x20] sm:$0xff]
    %v80 = vld [vmem:[#allocation4 + $0x28] sm:$0xff]
    %v81 = vld [vmem:[#allocation4 + $0x30] sm:$0xff]
    %v82 = vld [vmem:[#allocation4 + $0x38] sm:$0xff]
    %v83 = vld [vmem:[#allocation4 + $0x40] sm:$0xff]
    %v84 = vld [vmem:[#allocation4 + $0x48] sm:$0xff]
    %v85 = vld [vmem:[#allocation4 + $0x50] sm:$0xff]
    %v86 = vld [vmem:[#allocation4 + $0x58] sm:$0xff]
    %v87 = vld [vmem:[#allocation4 + $0x60] sm:$0xff]
    %v88 = vld [vmem:[#allocation4 + $0x68] sm:$0xff]
    %v89 = vld [vmem:[#allocation4 + $0x70] sm:$0xff]
    %v90 = vld [vmem:[#allocation4 + $0x78] sm:$0xff]
    %91 = vmatprep.subr.mxu0 0.0
    %92 = vmatpush1.msra.mxu0 %v74
    %93 = vmatprep.subr.mxu0 0.0
    %94 = vmatpush1.msra.mxu0 %v73
    %95 = vmatprep.subr.mxu0 0.0
    %96 = vmatpush1.msra.mxu0 %v72
    %97 = vmatprep.subr.mxu0 0.0
    %98 = vmatpush1.msra.mxu0 %v71
    %99 = vmatprep.subr.mxu0 0.0
    %100 = vmatpush1.msra.mxu0 %v70
    %101 = vmatprep.subr.mxu0 0.0
    %102 = vmatpush1.msra.mxu0 %v69
    %103 = vmatprep.subr.mxu0 0.0
    %104 = vmatpush1.msra.mxu0 %v68
    %105 = vmatprep.subr.mxu0 0.0
    %106 = vmatpush1.msra.mxu0 %v67
    %107 = vmatprep.subr.mxu0 0.0
    %108 = vmatpush1.msra.mxu0 %v66
    %109 = vmatprep.subr.mxu0 0.0
    %110 = vmatpush1.msra.mxu0 %v65
    %111 = vmatprep.subr.mxu0 0.0
    %112 = vmatpush1.msra.mxu0 %v64
    %113 = vmatprep.subr.mxu0 0.0
    %114 = vmatpush1.msra.mxu0 %v63
    %115 = vmatprep.subr.mxu0 0.0
    %116 = vmatpush1.msra.mxu0 %v62
    %117 = vmatprep.subr.mxu0 0.0
    %118 = vmatpush1.msra.mxu0 %v61
    %119 = vmatprep.subr.mxu0 0.0
    %120 = vmatpush1.msra.mxu0 %v60
    %121 = vmatprep.subr.mxu0 0.0
    %122 = vmatpush1.msra.mxu0 %v59
    %123 = vmatprep.subr.mxu0 0.0
    %124 = vmatpush2.msra.mxu0 0.0
    %125 = vmatprep.subr.mxu0 0.0
    %126 = vmatpush2.msra.mxu0 0.0
    %127 = vmatprep.subr.mxu0 0.0
    %128 = vmatpush2.msra.mxu0 0.0
    %129 = vmatprep.subr.mxu0 0.0
    %130 = vmatpush2.msra.mxu0 0.0
    %131 = vmatprep.subr.mxu0 0.0
    %132 = vmatpush2.msra.mxu0 0.0
    %133 = vmatprep.subr.mxu0 0.0
    %134 = vmatpush2.msra.mxu0 0.0
    %135 = vmatprep.subr.mxu0 0.0
    %136 = vmatpush2.msra.mxu0 0.0
    %137 = vmatprep.subr.mxu0 0.0
    %138 = vmatpush2.msra.mxu0 0.0
    %139 = vmatprep.subr.mxu0 0.0
    %140 = vmatpush2.msra.mxu0 0.0
    %141 = vmatprep.subr.mxu0 0.0
    %142 = vmatpush2.msra.mxu0 0.0
    %143 = vmatprep.subr.mxu0 0.0
    %144 = vmatpush2.msra.mxu0 0.0
    %145 = vmatprep.subr.mxu0 0.0
    %146 = vmatpush2.msra.mxu0 0.0
    %147 = vmatprep.subr.mxu0 0.0
    %148 = vmatpush2.msra.mxu0 0.0
    %149 = vmatprep.subr.mxu0 0.0
    %150 = vmatpush2.msra.mxu0 0.0
    %151 = vmatprep.subr.mxu0 0.0
    %152 = vmatpush2.msra.mxu0 0.0
    %153 = vmatprep.subr.mxu0 0.0
    %154 = vmatpush2.msra.mxu0 0.0
    %155 = vmatprep.mubr.f32.mxu0 0.0
    %156 = vmatmul.mubr.f32.gmra.mxu0 %v55
    %v157 = vpop.f32.mrf.mxu0
    %v158 = vadd.f32 0.0, %v157
    %v159 = vpop.f32.mrf.mxu0
    %160 = vmatprep.mubr.f32.mxu0 0.0
    %161 = vmatmul.mubr.f32.gmra.mxu0 %v56
    %v162 = vpop.f32.mrf.mxu0
    %v163 = vadd.f32 0.0, %v162
    %v164 = vpop.f32.mrf.mxu0
    %165 = vdwg.mxu0
    %v166 = vld [vmem:[%s4] sm:$0xff]
    %v167 = vld [vmem:[%s4 + $0x8] sm:$0xff]
    %v168 = vadd.f32 %v166, %v158
    %v169 = vadd.f32 %v167, %v163
    %170 = vst [vmem:[%s4] sm:$0xff] %v168
    %171 = vst [vmem:[%s4 + $0x8] sm:$0xff] %v169
    %v172 = vld [vmem:[%s5] sm:$0xff]
    %v173 = vld [vmem:[%s5 + $0x8] sm:$0xff]
    %v174 = vsub.f32 %v172, %v158
    %v175 = vsub.f32 %v173, %v163
    %176 = vst [vmem:[%s5] sm:$0xff] %v174
    %177 = vst [vmem:[%s5 + $0x8] sm:$0xff] %v175
    %178 = vmatprep.subr.mxu0 0.0
    %179 = vmatpush1.msra.mxu0 %v90
    %180 = vmatprep.subr.mxu0 0.0
    %181 = vmatpush1.msra.mxu0 %v89
    %182 = vmatprep.subr.mxu0 0.0
    %183 = vmatpush1.msra.mxu0 %v88
    %184 = vmatprep.subr.mxu0 0.0
    %185 = vmatpush1.msra.mxu0 %v87
    %186 = vmatprep.subr.mxu0 0.0
    %187 = vmatpush1.msra.mxu0 %v86
    %188 = vmatprep.subr.mxu0 0.0
    %189 = vmatpush1.msra.mxu0 %v85
    %190 = vmatprep.subr.mxu0 0.0
    %191 = vmatpush1.msra.mxu0 %v84
    %192 = vmatprep.subr.mxu0 0.0
    %193 = vmatpush1.msra.mxu0 %v83
    %194 = vmatprep.subr.mxu0 0.0
    %195 = vmatpush1.msra.mxu0 %v82
    %196 = vmatprep.subr.mxu0 0.0
    %197 = vmatpush1.msra.mxu0 %v81
    %198 = vmatprep.subr.mxu0 0.0
    %199 = vmatpush1.msra.mxu0 %v80
    %200 = vmatprep.subr.mxu0 0.0
    %201 = vmatpush1.msra.mxu0 %v79
    %202 = vmatprep.subr.mxu0 0.0
    %203 = vmatpush1.msra.mxu0 %v78
    %204 = vmatprep.subr.mxu0 0.0
    %205 = vmatpush1.msra.mxu0 %v77
    %206 = vmatprep.subr.mxu0 0.0
    %207 = vmatpush1.msra.mxu0 %v76
    %208 = vmatprep.subr.mxu0 0.0
    %209 = vmatpush1.msra.mxu0 %v75
    %210 = vmatprep.subr.mxu0 0.0
    %211 = vmatpush2.msra.mxu0 0.0
    %212 = vmatprep.subr.mxu0 0.0
    %213 = vmatpush2.msra.mxu0 0.0
    %214 = vmatprep.subr.mxu0 0.0
    %215 = vmatpush2.msra.mxu0 0.0
    %216 = vmatprep.subr.mxu0 0.0
    %217 = vmatpush2.msra.mxu0 0.0
    %218 = vmatprep.subr.mxu0 0.0
    %219 = vmatpush2.msra.mxu0 0.0
    %220 = vmatprep.subr.mxu0 0.0
    %221 = vmatpush2.msra.mxu0 0.0
    %222 = vmatprep.subr.mxu0 0.0
    %223 = vmatpush2.msra.mxu0 0.0
    %224 = vmatprep.subr.mxu0 0.0
    %225 = vmatpush2.msra.mxu0 0.0
    %226 = vmatprep.subr.mxu0 0.0
    %227 = vmatpush2.msra.mxu0 0.0
    %228 = vmatprep.subr.mxu0 0.0
    %229 = vmatpush2.msra.mxu0 0.0
    %230 = vmatprep.subr.mxu0 0.0
    %231 = vmatpush2.msra.mxu0 0.0
    %232 = vmatprep.subr.mxu0 0.0
    %233 = vmatpush2.msra.mxu0 0.0
    %234 = vmatprep.subr.mxu0 0.0
    %235 = vmatpush2.msra.mxu0 0.0
    %236 = vmatprep.subr.mxu0 0.0
    %237 = vmatpush2.msra.mxu0 0.0
    %238 = vmatprep.subr.mxu0 0.0
    %239 = vmatpush2.msra.mxu0 0.0
    %240 = vmatprep.subr.mxu0 0.0
    %241 = vmatpush2.msra.mxu0 0.0
    %242 = vmatprep.mubr.f32.mxu0 0.0
    %243 = vmatmul.mubr.f32.gmra.mxu0 %v57
    %v244 = vpop.f32.mrf.mxu0
    %v245 = vadd.f32 0.0, %v244
    %v246 = vpop.f32.mrf.mxu0
    %247 = vmatprep.mubr.f32.mxu0 0.0
    %248 = vmatmul.mubr.f32.gmra.mxu0 %v58
    %v249 = vpop.f32.mrf.mxu0
    %v250 = vadd.f32 0.0, %v249
    %v251 = vpop.f32.mrf.mxu0
    %252 = vdwg.mxu0
    %v253 = vld [vmem:[%s4] sm:$0xff]
    %v254 = vld [vmem:[%s4 + $0x8] sm:$0xff]
    %v255 = vsub.f32 %v253, %v245
    %v256 = vsub.f32 %v254, %v250
    %257 = vst [vmem:[%s4] sm:$0xff] %v255
    %258 = vst [vmem:[%s4 + $0x8] sm:$0xff] %v256
    %v259 = vld [vmem:[%s5] sm:$0xff]
    %v260 = vld [vmem:[%s5 + $0x8] sm:$0xff]
    %v261 = vsub.f32 %v259, %v245
    %v262 = vsub.f32 %v260, %v250
    %263 = vst [vmem:[%s5] sm:$0xff] %v261
    %264 = vst [vmem:[%s5 + $0x8] sm:$0xff] %v262
    %v265 = vadd.f32 %v55, %v57
    %v266 = vadd.f32 %v56, %v58
    %v267 = vadd.f32 %v59, %v75
    %v268 = vadd.f32 %v60, %v76
    %v269 = vadd.f32 %v61, %v77
    %v270 = vadd.f32 %v62, %v78
    %v271 = vadd.f32 %v63, %v79
    %v272 = vadd.f32 %v64, %v80
    %v273 = vadd.f32 %v65, %v81
    %v274 = vadd.f32 %v66, %v82
    %v275 = vadd.f32 %v67, %v83
    %v276 = vadd.f32 %v68, %v84
    %v277 = vadd.f32 %v69, %v85
    %v278 = vadd.f32 %v70, %v86
    %v279 = vadd.f32 %v71, %v87
    %v280 = vadd.f32 %v72, %v88
    %v281 = vadd.f32 %v73, %v89
    %v282 = vadd.f32 %v74, %v90
    %283 = vmatprep.subr.mxu0 0.0
    %284 = vmatpush1.msra.mxu0 %v282
    %285 = vmatprep.subr.mxu0 0.0
    %286 = vmatpush1.msra.mxu0 %v281
    %287 = vmatprep.subr.mxu0 0.0
    %288 = vmatpush1.msra.mxu0 %v280
    %289 = vmatprep.subr.mxu0 0.0
    %290 = vmatpush1.msra.mxu0 %v279
    %291 = vmatprep.subr.mxu0 0.0
    %292 = vmatpush1.msra.mxu0 %v278
    %293 = vmatprep.subr.mxu0 0.0
    %294 = vmatpush1.msra.mxu0 %v277
    %295 = vmatprep.subr.mxu0 0.0
    %296 = vmatpush1.msra.mxu0 %v276
    %297 = vmatprep.subr.mxu0 0.0
    %298 = vmatpush1.msra.mxu0 %v275
    %299 = vmatprep.subr.mxu0 0.0
    %300 = vmatpush1.msra.mxu0 %v274
    %301 = vmatprep.subr.mxu0 0.0
    %302 = vmatpush1.msra.mxu0 %v273
    %303 = vmatprep.subr.mxu0 0.0
    %304 = vmatpush1.msra.mxu0 %v272
    %305 = vmatprep.subr.mxu0 0.0
    %306 = vmatpush1.msra.mxu0 %v271
    %307 = vmatprep.subr.mxu0 0.0
    %308 = vmatpush1.msra.mxu0 %v270
    %309 = vmatprep.subr.mxu0 0.0
    %310 = vmatpush1.msra.mxu0 %v269
    %311 = vmatprep.subr.mxu0 0.0
    %312 = vmatpush1.msra.mxu0 %v268
    %313 = vmatprep.subr.mxu0 0.0
    %314 = vmatpush1.msra.mxu0 %v267
    %315 = vmatprep.subr.mxu0 0.0
    %316 = vmatpush2.msra.mxu0 0.0
    %317 = vmatprep.subr.mxu0 0.0
    %318 = vmatpush2.msra.mxu0 0.0
    %319 = vmatprep.subr.mxu0 0.0
    %320 = vmatpush2.msra.mxu0 0.0
    %321 = vmatprep.subr.mxu0 0.0
    %322 = vmatpush2.msra.mxu0 0.0
    %323 = vmatprep.subr.mxu0 0.0
    %324 = vmatpush2.msra.mxu0 0.0
    %325 = vmatprep.subr.mxu0 0.0
    %326 = vmatpush2.msra.mxu0 0.0
    %327 = vmatprep.subr.mxu0 0.0
    %328 = vmatpush2.msra.mxu0 0.0
    %329 = vmatprep.subr.mxu0 0.0
    %330 = vmatpush2.msra.mxu0 0.0
    %331 = vmatprep.subr.mxu0 0.0
    %332 = vmatpush2.msra.mxu0 0.0
    %333 = vmatprep.subr.mxu0 0.0
    %334 = vmatpush2.msra.mxu0 0.0
    %335 = vmatprep.subr.mxu0 0.0
    %336 = vmatpush2.msra.mxu0 0.0
    %337 = vmatprep.subr.mxu0 0.0
    %338 = vmatpush2.msra.mxu0 0.0
    %339 = vmatprep.subr.mxu0 0.0
    %340 = vmatpush2.msra.mxu0 0.0
    %341 = vmatprep.subr.mxu0 0.0
    %342 = vmatpush2.msra.mxu0 0.0
    %343 = vmatprep.subr.mxu0 0.0
    %344 = vmatpush2.msra.mxu0 0.0
    %345 = vmatprep.subr.mxu0 0.0
    %346 = vmatpush2.msra.mxu0 0.0
    %347 = vmatprep.mubr.f32.mxu0 0.0
    %348 = vmatmul.mubr.f32.gmra.mxu0 %v265
    %v349 = vpop.f32.mrf.mxu0
    %v350 = vadd.f32 0.0, %v349
    %v351 = vpop.f32.mrf.mxu0
    %352 = vmatprep.mubr.f32.mxu0 0.0
    %353 = vmatmul.mubr.f32.gmra.mxu0 %v266
    %v354 = vpop.f32.mrf.mxu0
    %v355 = vadd.f32 0.0, %v354
    %v356 = vpop.f32.mrf.mxu0
    %357 = vdwg.mxu0
    %v358 = vld [vmem:[%s5] sm:$0xff]
    %v359 = vld [vmem:[%s5 + $0x8] sm:$0xff]
    %v360 = vadd.f32 %v358, %v350
    %v361 = vadd.f32 %v359, %v355
    %362 = vst [vmem:[%s5] sm:$0xff] %v360
    %363 = vst [vmem:[%s5 + $0x8] sm:$0xff] %v361
    // Predicated region
    $region30: #{_complex_linear_prepared.1} parent=1 // pred_check
      _
    $region31: #{_complex_linear_prepared.1} parent=1 // pred_check_branch
      %365 = sbr.rel (0) target = $region33
    $region32: #{_complex_linear_prepared.1} parent=1 // pred_region
      _
    $region33: #{_complex_linear_prepared.1} parent=1 // pred_fallthru
      _
    // Predicated region
    $region34: #{_complex_linear_prepared.1} parent=1 // pred_check
      _
    $region35: #{_complex_linear_prepared.1} parent=1 // pred_check_branch
      %367 = sbr.rel (0) target = $region37
    $region36: #{_complex_linear_prepared.1} parent=1 // pred_region
      _
    $region37: #{_complex_linear_prepared.1} parent=1 // pred_fallthru
      _
    // Predicated region
    $region38: #{_complex_linear_prepared.1} parent=1 // pred_check
      _
    $region39: #{_complex_linear_prepared.1} parent=1 // pred_check_branch
      %369 = sbr.rel (0) target = $region41
    $region40: #{_complex_linear_prepared.1} parent=1 // pred_region
      _
    $region41: #{_complex_linear_prepared.1} parent=1 // pred_fallthru
      _
    // Predicated region
    $region42: #{_complex_linear_prepared.1} parent=1 // pred_check
      _
    $region43: #{_complex_linear_prepared.1} parent=1 // pred_check_branch
      %371 = sbr.rel (0) target = $region45
    $region44: #{_complex_linear_prepared.1} parent=1 // pred_region
      _
    $region45: #{_complex_linear_prepared.1} parent=1 // pred_fallthru
      _
    %372 = vsyncpa [#allocation3], 1
    %373 = vsyncpa [#allocation5], 1

</llo_original>
